<compile_context>
chip_gen: v7x
topology: tpu7x:2x2x1
jax: 0.10.0
libtpu: 0.0.40
codegen_flags: <defaults>
</compile_context>

<pallas_src>
import jax
import jax.numpy as jnp
from jax.experimental import pallas as pl
from jax.experimental.pallas import tpu as pltpu


def _round_up(x, m):
    return (x + m - 1) // m * m


# ---------------------------------------------------------------------------
# Pallas kernel 1: tiled  y = act(x @ w + b)   (used for conv-as-matmul)
# ---------------------------------------------------------------------------
def _linear_act_kernel(activation: str):
    def kernel(x_ref, w_ref, b_ref, o_ref):
        x = x_ref[...].astype(jnp.bfloat16)                       # bf16 -> full MXU rate
        y = jnp.dot(x, w_ref[...], preferred_element_type=jnp.float32)
        y = y + b_ref[...]                                        # [1,N] broadcasts over rows
        if activation == "leaky_relu":                            # nn.LeakyReLU(0.01)
            y = jnp.where(y >= 0, y, 0.01 * y)
        elif activation == "tanh":                                # nn.Tanh()
            y = jnp.tanh(y)
        elif activation != "none":
            raise ValueError(f"unknown activation {activation}")
        o_ref[...] = y
    return kernel


def linear_act_pallas(x, w_bf16, b_row, activation="none", tm=512):
    """act(x @ w + b).  x:[M,K] (any float dtype), w:[K,N] bf16, b:[1,N] f32 -> [M,N] f32.

    Grid is tiled over M (parallel) so DMA pipelines with compute and the per-step
    VMEM footprint stays small regardless of batch size.
    """
    M, K = x.shape
    Kw, N = w_bf16.shape
    assert K == Kw, (K, Kw)
    # Row tile: multiple of 8 sublanes; 512 rows ~= 85% of HBM roofline in sweeps.
    tm = min(tm, _round_up(M, 8))
    Mp = _round_up(M, tm)
    if Mp != M:
        x = jnp.pad(x, ((0, Mp - M), (0, 0)))
    # NOTE: if K (e.g. fc_0's flat dim) ever outgrows a single VMEM block, add a
    # trailing "arbitrary" K grid axis with an f32 VMEM accumulator + pl.when
    # init/finalize.  For this model K <= a few hundred, so one block suffices.
    out = pl.pallas_call(
        _linear_act_kernel(activation),
        out_shape=jax.ShapeDtypeStruct((Mp, N), jnp.float32),
        grid=(Mp // tm,),
        in_specs=[
            pl.BlockSpec((tm, K), lambda i: (i, 0)),
            pl.BlockSpec((K, N), lambda i: (0, 0)),   # weights resident (same block each step)
            pl.BlockSpec((1, N), lambda i: (0, 0)),
        ],
        out_specs=pl.BlockSpec((tm, N), lambda i: (i, 0)),
        compiler_params=pltpu.CompilerParams(dimension_semantics=("parallel",)),
    )(x, w_bf16, b_row)
    return out[:M] if Mp != M else out


# ---------------------------------------------------------------------------
# Pallas kernel 2: fused MLP tail
#   fc_0 + LeakyReLU  ->  [actor_fc | critic_fc] + Tanh  ->  block-diag heads
# One launch, lane-dense [M, 128] output (A logits, 1 value, rest zero-padding).
# ---------------------------------------------------------------------------
def _fused_tail_kernel(x_ref, w0_ref, b0_ref, w1_ref, b1_ref, w2_ref, b2_ref, o_ref):
    h = jnp.dot(x_ref[...].astype(jnp.bfloat16), w0_ref[...],
                preferred_element_type=jnp.float32) + b0_ref[...]
    h = jnp.where(h >= 0, h, 0.01 * h)                            # fc_0 + LeakyReLU
    h = jnp.dot(h.astype(jnp.bfloat16), w1_ref[...],
                preferred_element_type=jnp.float32) + b1_ref[...]
    h = jnp.tanh(h)                                               # actor/critic fc + Tanh
    o_ref[...] = jnp.dot(h.astype(jnp.bfloat16), w2_ref[...],     # block-diag output heads
                         preferred_element_type=jnp.float32) + b2_ref[...]


def fused_tail_pallas(x, w0, b0, w1, b1, w2, b2, tm=512):
    M, F = x.shape
    H0 = w0.shape[1]
    H2 = w1.shape[1]
    NP = w2.shape[1]                                              # lane-padded (multiple of 128)
    tm = min(tm, _round_up(M, 8))
    Mp = _round_up(M, tm)
    if Mp != M:
        x = jnp.pad(x, ((0, Mp - M), (0, 0)))
    out = pl.pallas_call(
        _fused_tail_kernel,
        out_shape=jax.ShapeDtypeStruct((Mp, NP), jnp.float32),
        grid=(Mp // tm,),
        in_specs=[
            pl.BlockSpec((tm, F), lambda i: (i, 0)),
            pl.BlockSpec((F, H0), lambda i: (0, 0)),
            pl.BlockSpec((1, H0), lambda i: (0, 0)),
            pl.BlockSpec((H0, H2), lambda i: (0, 0)),
            pl.BlockSpec((1, H2), lambda i: (0, 0)),
            pl.BlockSpec((H2, NP), lambda i: (0, 0)),
            pl.BlockSpec((1, NP), lambda i: (0, 0)),
        ],
        out_specs=pl.BlockSpec((tm, NP), lambda i: (i, 0)),
        compiler_params=pltpu.CompilerParams(dimension_semantics=("parallel",)),
    )(x, w0, b0, w1, b1, w2, b2)
    return out[:M] if Mp != M else out


# ---------------------------------------------------------------------------
# Glue: channel-last im2col (pure data movement, stays outside the kernels)
# ---------------------------------------------------------------------------
def im2col_nhwc(x, kh, kw, stride):
    """x: [B,H,W,C] -> patches [B*OH*OW, kh*kw*C] (kernel-window major, C last -> lanes)."""
    B, H, W, C = x.shape
    OH = (H - kh) // stride + 1
    OW = (W - kw) // stride + 1
    cols = []
    for i in range(kh):
        for j in range(kw):
            cols.append(x[:, i:i + stride * OH:stride, j:j + stride * OW:stride, :])
    p = jnp.stack(cols, axis=3)                                   # [B, OH, OW, kh*kw, C]
    return p.reshape(B * OH * OW, kh * kw * C), OH, OW


def conv2d_layer(x_nhwc, w_mat, b_row, stride, kh, kw, use_pallas=True):
    """Conv2d (PyTorch semantics) + LeakyReLU on NHWC activations, via im2col matmul."""
    B = x_nhwc.shape[0]
    patches, OH, OW = im2col_nhwc(x_nhwc, kh, kw, stride)
    N = w_mat.shape[1]
    if use_pallas:
        y = linear_act_pallas(patches, w_mat, b_row, "leaky_relu")
    else:  # pure-JAX reference path (same bf16 math as the kernel)
        y = jnp.dot(patches.astype(jnp.bfloat16), w_mat,
                    preferred_element_type=jnp.float32) + b_row
        y = jnp.where(y >= 0, y, 0.01 * y)
    return y.reshape(B, OH, OW, N)                                # stay NHWC


# ---------------------------------------------------------------------------
# Deterministic parameter construction (shapes follow Conv2DModelFree.__init__)
# ---------------------------------------------------------------------------
def _uniform(key, shape, fan_in):
    limit = (6.0 / fan_in) ** 0.5
    return jax.random.uniform(key, shape, jnp.float32, -limit, limit)


def init_params(key, obs_shape, conv_layers, fc_layers, num_actions):
    C, H, W = obs_shape
    keys = iter(jax.random.split(key, 32))
    params = {}

    in_c, h, w = C, H, W
    params["convs"] = []
    for (out_c, k, s) in conv_layers:
        wk = _uniform(next(keys), (out_c, in_c, k, k), in_c * k * k)
        bk = jnp.full((out_c,), 0.01, jnp.float32)
        params["convs"].append((wk, bk, s))
        in_c = out_c
        h = (h - k) // s + 1
        w = (w - k) // s + 1
    flat = in_c * h * w

    params["fc0_w"] = _uniform(next(keys), (flat, fc_layers[0]), flat)
    params["fc0_b"] = jnp.full((fc_layers[0],), 0.01, jnp.float32)

    params["actor_fc_w"] = _uniform(next(keys), (fc_layers[0], fc_layers[1]), fc_layers[0])
    params["actor_fc_b"] = jnp.full((fc_layers[1],), 0.01, jnp.float32)
    params["actor_out_w"] = _uniform(next(keys), (fc_layers[1], num_actions), fc_layers[1])
    params["actor_out_b"] = jnp.full((num_actions,), 0.01, jnp.float32)

    params["critic_fc_w"] = _uniform(next(keys), (fc_layers[0], fc_layers[1]), fc_layers[0])
    params["critic_fc_b"] = jnp.full((fc_layers[1],), 0.01, jnp.float32)
    params["critic_out_w"] = _uniform(next(keys), (fc_layers[1], 1), fc_layers[1])
    params["critic_out_b"] = jnp.full((1,), 0.01, jnp.float32)
    return params


def pack_params(params, num_actions, lane_pad=128):
    """Pre-pack weights into kernel layout:
       * bf16 matmul operands, f32 [1,N] bias rows,
       * 1/255 input scale folded into conv_0's weights (exact — conv is linear),
       * conv weights reordered to match channel-last im2col,
       * actor/critic tail concatenated + block-diagonal, lane-padded to 128."""
    packed = {}

    convs = []
    for li, (wk, bk, s) in enumerate(params["convs"]):
        Cout, Cin, kh, kw = wk.shape
        w = wk / 255.0 if li == 0 else wk                          # fold inputs / 255.0
        w_mat = w.transpose(2, 3, 1, 0).reshape(kh * kw * Cin, Cout).astype(jnp.bfloat16)
        convs.append((w_mat, bk.reshape(1, Cout).astype(jnp.float32), s, kh, kw))
    packed["convs"] = convs

    packed["w0"] = params["fc0_w"].astype(jnp.bfloat16)
    packed["b0"] = params["fc0_b"].reshape(1, -1).astype(jnp.float32)

    packed["w1"] = jnp.concatenate(
        [params["actor_fc_w"], params["critic_fc_w"]], axis=1).astype(jnp.bfloat16)
    packed["b1"] = jnp.concatenate(
        [params["actor_fc_b"], params["critic_fc_b"]]).reshape(1, -1).astype(jnp.float32)

    H1 = params["actor_fc_w"].shape[1]
    A = num_actions
    NP = _round_up(A + 1, lane_pad)                                # lane-dense output width
    w2 = jnp.zeros((2 * H1, NP), jnp.float32)
    w2 = w2.at[:H1, :A].set(params["actor_out_w"])
    w2 = w2.at[H1:, A:A + 1].set(params["critic_out_w"])
    b2 = jnp.zeros((NP,), jnp.float32)
    b2 = b2.at[:A].set(params["actor_out_b"])
    b2 = b2.at[A:A + 1].set(params["critic_out_b"])
    packed["w2"] = w2.astype(jnp.bfloat16)
    packed["b2"] = b2.reshape(1, NP).astype(jnp.float32)
    return packed


# ---------------------------------------------------------------------------
# Forward pass (Pallas and pure-JAX reference with identical bf16 math)
# ---------------------------------------------------------------------------
def model_free_forward(packed, inputs_nchw, num_actions, use_pallas=True):
    """inputs [B, C, H, W] (PyTorch layout) -> (action_logits [B, A], value [B, 1])."""
    B = inputs_nchw.shape[0]
    A = num_actions

    x = jnp.transpose(inputs_nchw, (0, 2, 3, 1))                   # NCHW -> NHWC once
    for (w_mat, b_row, s, kh, kw) in packed["convs"]:
        x = conv2d_layer(x, w_mat, b_row, s, kh, kw, use_pallas=use_pallas)
    # single tiny transpose so nn.Flatten() keeps PyTorch's (C, H, W) ordering for fc_0
    x = jnp.transpose(x, (0, 3, 1, 2)).reshape(B, -1)

    if use_pallas:
        out = fused_tail_pallas(x, packed["w0"], packed["b0"],
                                packed["w1"], packed["b1"],
                                packed["w2"], packed["b2"])
    else:
        h = jnp.dot(x.astype(jnp.bfloat16), packed["w0"],
                    preferred_element_type=jnp.float32) + packed["b0"]
        h = jnp.where(h >= 0, h, 0.01 * h)
        h = jnp.dot(h.astype(jnp.bfloat16), packed["w1"],
                    preferred_element_type=jnp.float32) + packed["b1"]
        h = jnp.tanh(h)
        out = jnp.dot(h.astype(jnp.bfloat16), packed["w2"],
                      preferred_element_type=jnp.float32) + packed["b2"]

    return out[:, :A], out[:, A:A + 1]                             # logits, value


# ---------------------------------------------------------------------------
if __name__ == "__main__":
    # small config consistent with Conv2DModelFree(base_kwargs)
    obs_shape = (4, 16, 16)                  # (channels, height, width)
    conv_layers = [(8, 3, 2), (16, 3, 2)]    # (out_channels, kernel, stride)
    fc_layers = [32, 32]
    num_actions = 6
    batch = 2

    key = jax.random.PRNGKey(0)
    k_par, k_x = jax.random.split(key)
    params = init_params(k_par, obs_shape, conv_layers, fc_layers, num_actions)
    packed = pack_params(params, num_actions)
    x = jax.random.uniform(k_x, (batch,) + obs_shape, jnp.float32, 0.0, 255.0)

    logits, value = model_free_forward(packed, x, num_actions, use_pallas=True)
    jax.block_until_ready((logits, value))

    # pure-JAX reference (same bf16 matmul math) for correctness
    ref_logits, ref_value = model_free_forward(packed, x, num_actions, use_pallas=False)
    assert logits.shape == (batch, num_actions) and value.shape == (batch, 1)
    assert jnp.allclose(logits, ref_logits, atol=1e-2, rtol=1e-2)
    assert jnp.allclose(value, ref_value, atol=1e-2, rtol=1e-2)

    print("KERNEL_OK")
</pallas_src>

<mosaic_0001>
module attributes {stable_mosaic.version = 11 : i64} {
  func.func @kernel(%arg0: i32, %arg1: memref<104x36xf32, #tpu.memory_space<vmem>>, %arg2: memref<36x8xbf16, #tpu.memory_space<vmem>>, %arg3: memref<1x8xf32, #tpu.memory_space<vmem>>, %arg4: memref<104x8xf32, #tpu.memory_space<vmem>>) attributes {dimension_semantics = [#tpu.dimension_semantics<parallel>], iteration_bounds = array<i64: 1>, scalar_prefetch = 0 : i64, scratch_operands = 0 : i64, tpu.core_type = #tpu.core_type<tc>, window_params = [{transform_indices = @transform_0, window_bounds = array<i64: 104, 36>}, {pipeline_mode = #tpu.pipeline_mode<synchronous>, transform_indices = @transform_1, window_bounds = array<i64: 36, 8>}, {pipeline_mode = #tpu.pipeline_mode<synchronous>, transform_indices = @transform_2, window_bounds = array<i64: 1, 8>}, {transform_indices = @transform_3, window_bounds = array<i64: 104, 8>}]} {
    %c0 = arith.constant 0 : index
    %c0_0 = arith.constant 0 : index
    %0 = vector.load %arg1[%c0, %c0_0] : memref<104x36xf32, #tpu.memory_space<vmem>>, vector<104x36xf32>
    %1 = arith.truncf %0 : vector<104x36xf32> to vector<104x36xbf16>
    %c0_1 = arith.constant 0 : index
    %c0_2 = arith.constant 0 : index
    %2 = vector.load %arg2[%c0_1, %c0_2] : memref<36x8xbf16, #tpu.memory_space<vmem>>, vector<36x8xbf16>
    %cst = arith.constant dense<0.000000e+00> : vector<104x8xf32>
    %3 = tpu.matmul %1, %2, %cst {dimension_numbers = #tpu.dot_dimension_numbers<[1], [0], [0], [1], [0, 0, 1, 1], [], []>} : vector<104x36xbf16>, vector<36x8xbf16>, vector<104x8xf32> -> vector<104x8xf32>
    %c0_3 = arith.constant 0 : index
    %c0_4 = arith.constant 0 : index
    %4 = vector.load %arg3[%c0_3, %c0_4] : memref<1x8xf32, #tpu.memory_space<vmem>>, vector<1x8xf32>
    %5 = vector.broadcast %4 : vector<1x8xf32> to vector<104x8xf32>
    %6 = arith.addf %3, %5 : vector<104x8xf32>
    %cst_5 = arith.constant 0.000000e+00 : f32
    %7 = vector.broadcast %cst_5 : f32 to vector<104x8xf32>
    %8 = arith.cmpf oge, %6, %7 : vector<104x8xf32>
    %cst_6 = arith.constant 0.00999999977 : f32
    %9 = vector.broadcast %cst_6 : f32 to vector<104x8xf32>
    %10 = arith.mulf %9, %6 : vector<104x8xf32>
    %11 = arith.select %8, %6, %10 : vector<104x8xi1>, vector<104x8xf32>
    %c0_7 = arith.constant 0 : index
    %c0_8 = arith.constant 0 : index
    %12 = vector.load %arg4[%c0_7, %c0_8] : memref<104x8xf32, #tpu.memory_space<vmem>>, vector<104x8xf32>
    tpu.vector_store %arg4[%c0_7, %c0_8], %11 {strides = array<i32>} : memref<104x8xf32, #tpu.memory_space<vmem>>, vector<104x8xf32>,
    return
  }
  func.func @transform_0(%arg0: i32) -> (i32, i32) {
    %c0_i32 = arith.constant 0 : i32
    %c0_i32_0 = arith.constant 0 : i32
    return %arg0, %c0_i32 : i32, i32
  }
  func.func @transform_1(%arg0: i32) -> (i32, i32) {
    %c0_i32 = arith.constant 0 : i32
    %c0_i32_0 = arith.constant 0 : i32
    %c0_i32_1 = arith.constant 0 : i32
    return %c0_i32, %c0_i32_0 : i32, i32
  }
  func.func @transform_2(%arg0: i32) -> (i32, i32) {
    %c0_i32 = arith.constant 0 : i32
    %c0_i32_0 = arith.constant 0 : i32
    %c0_i32_1 = arith.constant 0 : i32
    return %c0_i32, %c0_i32_0 : i32, i32
  }
  func.func @transform_3(%arg0: i32) -> (i32, i32) {
    %c0_i32 = arith.constant 0 : i32
    %c0_i32_0 = arith.constant 0 : i32
    return %arg0, %c0_i32 : i32, i32
  }
}

</mosaic_0001>

<llo_original>
// kernel: tpu_custom_call.1
$region0: #{tpu_custom_call.1}
  #allocation0 [shape = 'u32[]', space=smem, size = 0x4, offset = 0x4, fixed_abs, tag = 'smem constant byte address 0x4 - core index']
  #allocation1 [shape = 'u32[144,128]{1,0:T(1,128)}', space=vmem, size = 0x12000, scoped, tag = 'internal scratch']
  %s0 = inlined_call_operand.vmem [shape: f32[104,36], index: 0, kind: input, shape index: {}]
  %s1 = inlined_call_operand.vmem [shape: bf16[36,8], index: 1, kind: input, shape index: {}]
  %s2 = inlined_call_operand.vmem [shape: f32[1,8], index: 2, kind: input, shape index: {}]
  %s3 = inlined_call_operand.vmem [shape: f32[104,8], index: 3, kind: output, shape index: {}]
  %s4 = sld [smem:[#allocation0]]
  $region22: #{tpu_custom_call.1} parent=0
    _
  %s6 = ssub.s32 1, %s4
  %s7 = scalar_select 0, %s6, %s4
  // Predicated region
  $region2: #{tpu_custom_call.1} parent=0 // pred_check
    _
  $region3: #{tpu_custom_call.1} parent=0 // pred_check_branch
    %9 = sbr.rel (0) target = $region5
  $region4: #{tpu_custom_call.1} parent=0 // pred_region
    _
  $region5: #{tpu_custom_call.1} parent=0 // pred_fallthru
    _
  // Predicated region
  $region6: #{tpu_custom_call.1} parent=0 // pred_check
    _
  $region7: #{tpu_custom_call.1} parent=0 // pred_check_branch
    %11 = sbr.rel (0) target = $region9
  $region8: #{tpu_custom_call.1} parent=0 // pred_region
    _
  $region9: #{tpu_custom_call.1} parent=0 // pred_fallthru
    _
  // Predicated region
  $region10: #{tpu_custom_call.1} parent=0 // pred_check
    _
  $region11: #{tpu_custom_call.1} parent=0 // pred_check_branch
    %13 = sbr.rel (0) target = $region13
  $region12: #{tpu_custom_call.1} parent=0 // pred_region
    _
  $region13: #{tpu_custom_call.1} parent=0 // pred_fallthru
    _
  %v15 = vld [vmem:[%s0] sm:$0xff]
  %v16 = vld [vmem:[%s0 + $0x8] sm:$0xff]
  %v17 = vld [vmem:[%s0 + $0x10] sm:$0xff]
  %v18 = vld [vmem:[%s0 + $0x18] sm:$0xff]
  %v19 = vld [vmem:[%s0 + $0x20] sm:$0xff]
  %v20 = vld [vmem:[%s0 + $0x28] sm:$0xff]
  %v21 = vld [vmem:[%s0 + $0x30] sm:$0xff]
  %v22 = vld [vmem:[%s0 + $0x38] sm:$0xff]
  %v23 = vld [vmem:[%s0 + $0x40] sm:$0xff]
  %v24 = vld [vmem:[%s0 + $0x48] sm:$0xff]
  %v25 = vld [vmem:[%s0 + $0x50] sm:$0xff]
  %v26 = vld [vmem:[%s0 + $0x58] sm:$0xff]
  %v27 = vld [vmem:[%s0 + $0x60] sm:$0xff]
  %v28 = vpack.c.bf16 %v16, %v15
  %v29 = vpack.c.bf16 %v18, %v17
  %v30 = vpack.c.bf16 %v20, %v19
  %v31 = vpack.c.bf16 %v22, %v21
  %v32 = vpack.c.bf16 %v24, %v23
  %v33 = vpack.c.bf16 %v26, %v25
  %v34 = vpack.c.bf16 %v27, %v27
  %v35 = vld [vmem:[%s1] sm:$0xf]
  %v36 = vld [vmem:[%s1 + $0x4] sm:$0xf]
  %v37 = vld [vmem:[%s1 + $0x8] sm:$0xf]
  %v38 = vld [vmem:[%s1 + $0xc] sm:$0xf]
  %v39 = vld [vmem:[%s1 + $0x10] sm:$0x3]
  %v40 = vld [vmem:[%s2] sm:$0x1]
  %v42 = vlaneseq
  %v43 = vshrl.u32 %v42, 7
  %v44 = vsub.s32 0, %v43
  %v45 = vrot.slane %v40, %v44
  %v52 = vunpack.c.l.b16 %v35
  %v53 = vunpack.c.l.b16 %v36
  %v54 = vunpack.c.l.b16 %v37
  %v55 = vunpack.c.l.b16 %v38
  %v56 = vunpack.c.l.b16 %v39
  %v57 = vpack.c.b16 %v53, %v52
  %v58 = vpack.c.b16 %v55, %v54
  %v59 = vpack.c.b16 %v56, %v56
  %vm62 = vcmask 293888
  %v64 = vsel %vm62, %v28, 0
  %v67 = vsel %vm62, %v29, 0
  %v70 = vsel %vm62, %v30, 0
  %v73 = vsel %vm62, %v31, 0
  %v76 = vsel %vm62, %v32, 0
  %v79 = vsel %vm62, %v33, 0
  %v82 = vsel %vm62, %v34, 0
  %vm84 = vcmask 1041408
  %v86 = vsel %vm84, %v59, 0
  %88 = vmatprep.subr.bf16.mxu0 0
  %89 = vmatpush1.bf16.msra.mxu0 %v57
  %90 = vmatprep.subr.bf16.mxu0 0
  %91 = vmatpush1.bf16.msra.mxu0 %v58
  %92 = vmatprep.subr.bf16.mxu0 0
  %93 = vmatpush1.bf16.msra.mxu0 %v86
  %94 = vmatprep.subr.bf16.mxu0 0
  %95 = vmatpush1.bf16.msra.mxu0 0
  %96 = vmatprep.subr.bf16.mxu0 0
  %97 = vmatpush1.bf16.msra.mxu0 0
  %98 = vmatprep.subr.bf16.mxu0 0
  %99 = vmatpush1.bf16.msra.mxu0 0
  %100 = vmatprep.subr.bf16.mxu0 0
  %101 = vmatpush1.bf16.msra.mxu0 0
  %102 = vmatprep.subr.bf16.mxu0 0
  %103 = vmatpush1.bf16.msra.mxu0 0
  %104 = vmatprep.subr.bf16.mxu0 0
  %105 = vmatpush1.bf16.msra.mxu0 0
  %106 = vmatprep.subr.bf16.mxu0 0
  %107 = vmatpush1.bf16.msra.mxu0 0
  %108 = vmatprep.subr.bf16.mxu0 0
  %109 = vmatpush1.bf16.msra.mxu0 0
  %110 = vmatprep.subr.bf16.mxu0 0
  %111 = vmatpush1.bf16.msra.mxu0 0
  %112 = vmatprep.subr.bf16.mxu0 0
  %113 = vmatpush1.bf16.msra.mxu0 0
  %114 = vmatprep.subr.bf16.mxu0 0
  %115 = vmatpush1.bf16.msra.mxu0 0
  %116 = vmatprep.subr.bf16.mxu0 0
  %117 = vmatpush1.bf16.msra.mxu0 0
  %118 = vmatprep.subr.bf16.mxu0 0
  %119 = vmatpush1.bf16.msra.mxu0 0
  %120 = vmatprep.mubr.bf16.mxu0 0
  %121 = vmatmul.mubr.bf16.gmra.mrb[0].mxu0 %v64
  %v122 = vpop.f32.mrb[0].mxu0
  %v123 = vadd.f32 %v45, %v122
  %v124 = vpop.f32.mrb[0].mxu0
  %v125 = vpop.f32.mrb[0].mxu0
  %v126 = vadd.f32 %v45, %v125
  %v127 = vpop.f32.mrb[0].mxu0
  %128 = vmatprep.mubr.bf16.mxu0 0
  %129 = vmatmul.mubr.bf16.gmra.mrb[0].mxu0 %v67
  %v130 = vpop.f32.mrb[0].mxu0
  %v131 = vadd.f32 %v45, %v130
  %v132 = vpop.f32.mrb[0].mxu0
  %v133 = vpop.f32.mrb[0].mxu0
  %v134 = vadd.f32 %v45, %v133
  %v135 = vpop.f32.mrb[0].mxu0
  %136 = vmatprep.mubr.bf16.mxu0 0
  %137 = vmatmul.mubr.bf16.gmra.mrb[0].mxu0 %v70
  %v138 = vpop.f32.mrb[0].mxu0
  %v139 = vadd.f32 %v45, %v138
  %v140 = vpop.f32.mrb[0].mxu0
  %v141 = vpop.f32.mrb[0].mxu0
  %v142 = vadd.f32 %v45, %v141
  %v143 = vpop.f32.mrb[0].mxu0
  %144 = vmatprep.mubr.bf16.mxu0 0
  %145 = vmatmul.mubr.bf16.gmra.mrb[0].mxu0 %v73
  %v146 = vpop.f32.mrb[0].mxu0
  %v147 = vadd.f32 %v45, %v146
  %v148 = vpop.f32.mrb[0].mxu0
  %v149 = vpop.f32.mrb[0].mxu0
  %v150 = vadd.f32 %v45, %v149
  %v151 = vpop.f32.mrb[0].mxu0
  %152 = vmatprep.mubr.bf16.mxu0 0
  %153 = vmatmul.mubr.bf16.gmra.mrb[0].mxu0 %v76
  %v154 = vpop.f32.mrb[0].mxu0
  %v155 = vadd.f32 %v45, %v154
  %v156 = vpop.f32.mrb[0].mxu0
  %v157 = vpop.f32.mrb[0].mxu0
  %v158 = vadd.f32 %v45, %v157
  %v159 = vpop.f32.mrb[0].mxu0
  %160 = vmatprep.mubr.bf16.mxu0 0
  %161 = vmatmul.mubr.bf16.gmra.mrb[0].mxu0 %v79
  %v162 = vpop.f32.mrb[0].mxu0
  %v163 = vadd.f32 %v45, %v162
  %v164 = vpop.f32.mrb[0].mxu0
  %v165 = vpop.f32.mrb[0].mxu0
  %v166 = vadd.f32 %v45, %v165
  %v167 = vpop.f32.mrb[0].mxu0
  %168 = vmatprep.mubr.bf16.mxu0 0
  %169 = vmatmul.mubr.bf16.gmra.mrb[0].mxu0 %v82
  %v170 = vpop.f32.mrb[0].mxu0
  %v171 = vadd.f32 %v45, %v170
  %v172 = vpop.f32.mrb[0].mxu0
  %v173 = vpop.f32.mrb[0].mxu0
  %v174 = vpop.f32.mrb[0].mxu0
  %175 = vdwg.mxu0
  %vm176 = vcmp.ge.f32.partialorder %v123, 0.0
  %vm177 = vcmp.ge.f32.partialorder %v126, 0.0
  %vm178 = vcmp.ge.f32.partialorder %v131, 0.0
  %vm179 = vcmp.ge.f32.partialorder %v134, 0.0
  %vm180 = vcmp.ge.f32.partialorder %v139, 0.0
  %vm181 = vcmp.ge.f32.partialorder %v142, 0.0
  %vm182 = vcmp.ge.f32.partialorder %v147, 0.0
  %vm183 = vcmp.ge.f32.partialorder %v150, 0.0
  %vm184 = vcmp.ge.f32.partialorder %v155, 0.0
  %vm185 = vcmp.ge.f32.partialorder %v158, 0.0
  %vm186 = vcmp.ge.f32.partialorder %v163, 0.0
  %vm187 = vcmp.ge.f32.partialorder %v166, 0.0
  %vm188 = vcmp.ge.f32.partialorder %v171, 0.0
  %v189 = vmul.f32 %v123, 0.01
  %v190 = vmul.f32 %v126, 0.01
  %v191 = vmul.f32 %v131, 0.01
  %v192 = vmul.f32 %v134, 0.01
  %v193 = vmul.f32 %v139, 0.01
  %v194 = vmul.f32 %v142, 0.01
  %v195 = vmul.f32 %v147, 0.01
  %v196 = vmul.f32 %v150, 0.01
  %v197 = vmul.f32 %v155, 0.01
  %v198 = vmul.f32 %v158, 0.01
  %v199 = vmul.f32 %v163, 0.01
  %v200 = vmul.f32 %v166, 0.01
  %v201 = vmul.f32 %v171, 0.01
  %v202 = vsel %vm176, %v123, %v189
  %v203 = vsel %vm177, %v126, %v190
  %v204 = vsel %vm178, %v131, %v191
  %v205 = vsel %vm179, %v134, %v192
  %v206 = vsel %vm180, %v139, %v193
  %v207 = vsel %vm181, %v142, %v194
  %v208 = vsel %vm182, %v147, %v195
  %v209 = vsel %vm183, %v150, %v196
  %v210 = vsel %vm184, %v155, %v197
  %v211 = vsel %vm185, %v158, %v198
  %v212 = vsel %vm186, %v163, %v199
  %v213 = vsel %vm187, %v166, %v200
  %v214 = vsel %vm188, %v171, %v201
  %vm215 = vcmask 64512
  %216 = vst.msk [vmem:[%s3] sm:$0xff] %vm215, %v202
  %217 = vst.msk [vmem:[%s3 + $0x8] sm:$0xff] %vm215, %v203
  %218 = vst.msk [vmem:[%s3 + $0x10] sm:$0xff] %vm215, %v204
  %219 = vst.msk [vmem:[%s3 + $0x18] sm:$0xff] %vm215, %v205
  %220 = vst.msk [vmem:[%s3 + $0x20] sm:$0xff] %vm215, %v206
  %221 = vst.msk [vmem:[%s3 + $0x28] sm:$0xff] %vm215, %v207
  %222 = vst.msk [vmem:[%s3 + $0x30] sm:$0xff] %vm215, %v208
  %223 = vst.msk [vmem:[%s3 + $0x38] sm:$0xff] %vm215, %v209
  %224 = vst.msk [vmem:[%s3 + $0x40] sm:$0xff] %vm215, %v210
  %225 = vst.msk [vmem:[%s3 + $0x48] sm:$0xff] %vm215, %v211
  %226 = vst.msk [vmem:[%s3 + $0x50] sm:$0xff] %vm215, %v212
  %227 = vst.msk [vmem:[%s3 + $0x58] sm:$0xff] %vm215, %v213
  %228 = vst.msk [vmem:[%s3 + $0x60] sm:$0xff] %vm215, %v214
  // Predicated region
  $region14: #{tpu_custom_call.1} parent=0 // pred_check
    _
  $region15: #{tpu_custom_call.1} parent=0 // pred_check_branch
    %230 = sbr.rel (0) target = $region17
  $region16: #{tpu_custom_call.1} parent=0 // pred_region
    _
  $region17: #{tpu_custom_call.1} parent=0 // pred_fallthru
    _
  // Predicated region
  $region18: #{tpu_custom_call.1} parent=0 // pred_check
    _
  $region19: #{tpu_custom_call.1} parent=0 // pred_check_branch
    %232 = sbr.rel (0) target = $region21
  $region20: #{tpu_custom_call.1} parent=0 // pred_region
    _
  $region21: #{tpu_custom_call.1} parent=0 // pred_fallthru
    _

</llo_original>
